<compile_context>
chip_gen: v5e
topology: v5e:2x2
jax: 0.10.0
libtpu: 0.0.40
codegen_flags: <defaults>
</compile_context>

<pallas_src>
import functools

import jax
import jax.numpy as jnp
from jax.experimental import pallas as pl
from jax.experimental.pallas import tpu as pltpu

N_VERTS = 778
N_JOINTS = 21
N_CH = 3
K_DIM = N_VERTS * N_CH          # 2334: flattened per-sample contraction dim
OUT_LANES = 128                 # 3*21 = 63 joints*channels, padded to 128 lanes


def _round_up(x, m):
    return ((x + m - 1) // m) * m


def _adaptor_matmul_kernel(x_ref, w_ref, y_ref):
    # x_ref: (TB, 2334)  block of flattened vertices (native layout, no transpose)
    # w_ref: (2334, 128) block-diagonal expanded weight (resident across the grid)
    # y_ref: (TB, 128)   lane-dense output block; y[b, c*21 + j] = joints[b, c, j]
    # NOTE: default MXU precision (bf16 passes, f32 accumulate).  If bit-level
    # parity with a PyTorch f32 Linear is ever required, switch the dot to
    # precision=HIGHEST (free here: the kernel is HBM-bandwidth-bound).
    y_ref[...] = jnp.dot(
        x_ref[...], w_ref[...], preferred_element_type=jnp.float32
    ).astype(y_ref.dtype)


@functools.partial(jax.jit, static_argnames=("block_rows",))
def mano_adaptor_forward(inp, weight, j_regressor, *, block_rows=1024):
    """inp: (B, 778, 3) vertices; weight, j_regressor: (21, 778).

    Returns (joints, weight_diff) matching the PyTorch module:
      joints:      (B, 3, 21)   == Linear(w_eff)(inp.transpose(2, 1))
      weight_diff: (21, 778)    == effective_weight - J_regressor
    """
    B = inp.shape[0]
    out_dtype = inp.dtype

    # --- Hoisted out of the hot path (tiny): weight fix-up + weight diff ---
    fix_idxs = jnp.array([0, 4, 8, 12, 16, 20], dtype=jnp.int32)
    w_eff = weight.at[fix_idxs].set(j_regressor[fix_idxs])
    weight_diff = w_eff - j_regressor

    # --- Block-diagonal expanded weight (2334, 128), lane-padded 63 -> 128 ---
    # w_exp[v*3 + c, d*21 + j] = w_eff[j, v] * (c == d)
    eye3 = jnp.eye(N_CH, dtype=w_eff.dtype)
    w_exp = jnp.einsum("jv,cd->vcdj", w_eff, eye3).reshape(K_DIM, N_CH * N_JOINTS)
    w_exp = jnp.pad(w_exp, ((0, 0), (0, OUT_LANES - N_CH * N_JOINTS)))

    # --- Flatten vertices in native memory order: free reshape, NO transpose ---
    x2d = inp.reshape(B, K_DIM)

    # Row tile: full batch if tiny; otherwise split so the grid has >= 2 steps
    # (both v7x TensorCores get work), capped at block_rows (multiple of 8).
    if B <= 8:
        tm = B
    else:
        tm = min(block_rows, _round_up(pl.cdiv(B, 2), 8))
    grid_m = pl.cdiv(B, tm)

    x_item = jnp.dtype(x2d.dtype).itemsize
    w_item = jnp.dtype(w_exp.dtype).itemsize
    o_item = jnp.dtype(out_dtype).itemsize
    cost = pl.CostEstimate(
        flops=2 * B * K_DIM * OUT_LANES,
        transcendentals=0,
        bytes_accessed=(B * K_DIM * x_item
                        + K_DIM * OUT_LANES * w_item
                        + B * OUT_LANES * o_item),
    )

    y = pl.pallas_call(
        _adaptor_matmul_kernel,
        out_shape=jax.ShapeDtypeStruct((B, OUT_LANES), out_dtype),
        grid=(grid_m,),
        in_specs=[
            # x: tiled over batch rows; contiguous 2334-float rows per sample.
            pl.BlockSpec((tm, K_DIM), lambda i: (i, 0)),
            # w_exp: constant index_map -> fetched once, resident across grid.
            # (pipeline_mode=pl.Buffered(1) would save one ~1.2 MB buffer; kept
            #  at the default buffering for maximal compile portability.)
            pl.BlockSpec((K_DIM, OUT_LANES), lambda i: (0, 0)),
        ],
        out_specs=pl.BlockSpec((tm, OUT_LANES), lambda i: (i, 0)),  # lane-dense
        compiler_params=pltpu.CompilerParams(
            dimension_semantics=("parallel",),
            vmem_limit_bytes=48 * 1024 * 1024,   # v7x-safe (64 MiB physical/TC)
        ),
        cost_estimate=cost,
    )(x2d, w_exp)

    # (B, 128) -> (B, 3, 21): drop lane padding, tiny relayout in XLA.
    joints = y[:, : N_CH * N_JOINTS].reshape(B, N_CH, N_JOINTS)
    return joints, weight_diff


def _build_synthetic_params(key):
    """Deterministic stand-ins for the MANO J_regressor and a trained weight."""
    k1, k2 = jax.random.split(key)
    base_reg = jax.random.uniform(k1, (16, N_VERTS), jnp.float32)
    base_reg = base_reg / base_reg.sum(axis=1, keepdims=True)
    tip = jnp.zeros((5, N_VERTS), jnp.float32)
    for i, vidx in enumerate([745, 317, 444, 556, 673]):
        tip = tip.at[i, vidx].set(1.0)
    perm = jnp.array(
        [0, 13, 14, 15, 16, 1, 2, 3, 17, 4, 5, 6, 18, 10, 11, 12, 19, 7, 8, 9, 20],
        dtype=jnp.int32,
    )
    j_regressor = jnp.concatenate([base_reg, tip], axis=0)[perm]
    # Weight starts at J_regressor (as in __init__) plus a small "trained" delta.
    weight = j_regressor + 0.01 * jax.random.normal(k2, (N_JOINTS, N_VERTS), jnp.float32)
    return weight, j_regressor


def _reference(inp, weight, j_regressor):
    fix_idxs = jnp.array([0, 4, 8, 12, 16, 20])
    w_eff = weight.at[fix_idxs].set(j_regressor[fix_idxs])
    # out[b, c, j] = sum_v inp[b, v, c] * w_eff[j, v]
    joints = jnp.einsum("bvc,jv->bcj", inp, w_eff)
    return joints, w_eff - j_regressor


if __name__ == "__main__":
    key = jax.random.PRNGKey(0)
    kp, kx, kx2 = jax.random.split(key, 3)
    weight, j_regressor = _build_synthetic_params(kp)

    # Small batch: single full-array block path.
    B = 2
    verts = jax.random.normal(kx, (B, N_VERTS, 3), jnp.float32)
    joints, diff = mano_adaptor_forward(verts, weight, j_regressor)
    jax.block_until_ready((joints, diff))

    ref_joints, ref_diff = _reference(verts, weight, j_regressor)
    assert joints.shape == (B, 3, N_JOINTS)
    assert diff.shape == (N_JOINTS, N_VERTS)
    assert jnp.allclose(joints, ref_joints, atol=1e-4, rtol=1e-4)
    assert jnp.allclose(diff, ref_diff, atol=1e-6, rtol=1e-6)

    # Mid-size batch: exercises the multi-block grid (>= 2 steps for the two
    # v7x TensorCores) with a masked partial tail: B=45 -> tm=24, grid of 2.
    B2 = 45
    verts2 = jax.random.normal(kx2, (B2, N_VERTS, 3), jnp.float32)
    joints2, diff2 = mano_adaptor_forward(verts2, weight, j_regressor)
    jax.block_until_ready((joints2, diff2))
    ref_joints2, ref_diff2 = _reference(verts2, weight, j_regressor)
    assert joints2.shape == (B2, 3, N_JOINTS)
    assert jnp.allclose(joints2, ref_joints2, atol=1e-4, rtol=1e-4)
    assert jnp.allclose(diff2, ref_diff2, atol=1e-6, rtol=1e-6)

    print("KERNEL_OK")
</pallas_src>

<mosaic_0001>
module attributes {stable_mosaic.version = 11 : i64} {
  func.func @_adaptor_matmul_kernel(%arg0: i32, %arg1: memref<2x2334xf32, #tpu.memory_space<vmem>>, %arg2: memref<2334x128xf32, #tpu.memory_space<vmem>>, %arg3: memref<2x128xf32, #tpu.memory_space<vmem>>) attributes {dimension_semantics = [#tpu.dimension_semantics<parallel>], iteration_bounds = array<i64: 1>, scalar_prefetch = 0 : i64, scratch_operands = 0 : i64, tpu.core_type = #tpu.core_type<tc>, window_params = [{transform_indices = @transform_0, window_bounds = array<i64: 2, 2334>}, {pipeline_mode = #tpu.pipeline_mode<synchronous>, transform_indices = @transform_1, window_bounds = array<i64: 2334, 128>}, {transform_indices = @transform_2, window_bounds = array<i64: 2, 128>}]} {
    %c0 = arith.constant 0 : index
    %c0_0 = arith.constant 0 : index
    %0 = vector.load %arg1[%c0, %c0_0] : memref<2x2334xf32, #tpu.memory_space<vmem>>, vector<2x2334xf32>
    %c0_1 = arith.constant 0 : index
    %c0_2 = arith.constant 0 : index
    %1 = vector.load %arg2[%c0_1, %c0_2] : memref<2334x128xf32, #tpu.memory_space<vmem>>, vector<2334x128xf32>
    %cst = arith.constant dense<0.000000e+00> : vector<2x128xf32>
    %2 = tpu.matmul %0, %1, %cst {dimension_numbers = #tpu.dot_dimension_numbers<[1], [0], [0], [1], [0, 0, 1, 1], [], []>} : vector<2x2334xf32>, vector<2334x128xf32>, vector<2x128xf32> -> vector<2x128xf32>
    %c0_3 = arith.constant 0 : index
    %c0_4 = arith.constant 0 : index
    %3 = vector.load %arg3[%c0_3, %c0_4] : memref<2x128xf32, #tpu.memory_space<vmem>>, vector<2x128xf32>
    tpu.vector_store %arg3[%c0_3, %c0_4], %2 {strides = array<i32>} : memref<2x128xf32, #tpu.memory_space<vmem>>, vector<2x128xf32>,
    return
  }
  func.func @transform_0(%arg0: i32) -> (i32, i32) {
    %c0_i32 = arith.constant 0 : i32
    %c0_i32_0 = arith.constant 0 : i32
    return %arg0, %c0_i32 : i32, i32
  }
  func.func @transform_1(%arg0: i32) -> (i32, i32) {
    %c0_i32 = arith.constant 0 : i32
    %c0_i32_0 = arith.constant 0 : i32
    %c0_i32_1 = arith.constant 0 : i32
    return %c0_i32, %c0_i32_0 : i32, i32
  }
  func.func @transform_2(%arg0: i32) -> (i32, i32) {
    %c0_i32 = arith.constant 0 : i32
    %c0_i32_0 = arith.constant 0 : i32
    return %arg0, %c0_i32 : i32, i32
  }
}

</mosaic_0001>

<llo_original>
// kernel: mano_adaptor_forward.1
$region0: #{mano_adaptor_forward.1}
  #allocation0 [shape = 'u32[]', space=smem, size = 0x4, offset = 0x4, fixed_abs, tag = 'smem constant byte address 0x4 - core index']
  #allocation1 [shape = 'u32[72,128]{1,0:T(1,128)}', space=vmem, size = 0x9000, scoped, tag = 'internal scratch']
  %s0 = inlined_call_operand.vmem [shape: f32[2,2334], index: 0, kind: input, shape index: {}]
  %s1 = inlined_call_operand.vmem [shape: f32[2334,128], index: 1, kind: input, shape index: {}]
  %s2 = inlined_call_operand.vmem [shape: f32[2,128], index: 2, kind: output, shape index: {}]
  %s3 = sld [smem:[#allocation0]]
  $region18: #{mano_adaptor_forward.1} parent=0
    _
  %s5 = ssub.s32 1, %s3
  %s6 = scalar_select 0, %s5, %s3
  // Predicated region
  $region2: #{mano_adaptor_forward.1} parent=0 // pred_check
    _
  $region3: #{mano_adaptor_forward.1} parent=0 // pred_check_branch
    %8 = sbr.rel (0) target = $region5
  $region4: #{mano_adaptor_forward.1} parent=0 // pred_region
    _
  $region5: #{mano_adaptor_forward.1} parent=0 // pred_fallthru
    _
  // Predicated region
  $region6: #{mano_adaptor_forward.1} parent=0 // pred_check
    _
  $region7: #{mano_adaptor_forward.1} parent=0 // pred_check_branch
    %10 = sbr.rel (0) target = $region9
  $region8: #{mano_adaptor_forward.1} parent=0 // pred_region
    _
  $region9: #{mano_adaptor_forward.1} parent=0 // pred_fallthru
    _
  %v11 = vld [vmem:[%s0] sm:$0xff]
  %v12 = vld [vmem:[%s0 + $0x8] sm:$0xff]
  %v13 = vld [vmem:[%s0 + $0x10] sm:$0xff]
  %v14 = vld [vmem:[%s0 + $0x18] sm:$0xff]
  %v15 = vld [vmem:[%s0 + $0x20] sm:$0x3f]
  %v16 = vld [vmem:[%s1] sm:$0xff]
  %v17 = vld [vmem:[%s1 + $0x8] sm:$0xff]
  %v18 = vld [vmem:[%s1 + $0x10] sm:$0xff]
  %v19 = vld [vmem:[%s1 + $0x18] sm:$0xff]
  %v20 = vld [vmem:[%s1 + $0x20] sm:$0xff]
  %v21 = vld [vmem:[%s1 + $0x28] sm:$0xff]
  %v22 = vld [vmem:[%s1 + $0x30] sm:$0xff]
  %v23 = vld [vmem:[%s1 + $0x38] sm:$0xff]
  %v24 = vld [vmem:[%s1 + $0x40] sm:$0xff]
  %v25 = vld [vmem:[%s1 + $0x48] sm:$0xff]
  %v26 = vld [vmem:[%s1 + $0x50] sm:$0xff]
  %v27 = vld [vmem:[%s1 + $0x58] sm:$0xff]
  %v28 = vld [vmem:[%s1 + $0x60] sm:$0xff]
  %v29 = vld [vmem:[%s1 + $0x68] sm:$0xff]
  %v30 = vld [vmem:[%s1 + $0x70] sm:$0xff]
  %v31 = vld [vmem:[%s1 + $0x78] sm:$0xff]
  %v32 = vld [vmem:[%s1 + $0x80] sm:$0xff]
  %v33 = vld [vmem:[%s1 + $0x88] sm:$0xff]
  %v34 = vld [vmem:[%s1 + $0x90] sm:$0xff]
  %v35 = vld [vmem:[%s1 + $0x98] sm:$0xff]
  %v36 = vld [vmem:[%s1 + $0xa0] sm:$0xff]
  %v37 = vld [vmem:[%s1 + $0xa8] sm:$0xff]
  %v38 = vld [vmem:[%s1 + $0xb0] sm:$0xff]
  %v39 = vld [vmem:[%s1 + $0xb8] sm:$0xff]
  %v40 = vld [vmem:[%s1 + $0xc0] sm:$0xff]
  %v41 = vld [vmem:[%s1 + $0xc8] sm:$0xff]
  %v42 = vld [vmem:[%s1 + $0xd0] sm:$0xff]
  %v43 = vld [vmem:[%s1 + $0xd8] sm:$0xff]
  %v44 = vld [vmem:[%s1 + $0xe0] sm:$0xff]
  %v45 = vld [vmem:[%s1 + $0xe8] sm:$0xff]
  %v46 = vld [vmem:[%s1 + $0xf0] sm:$0xff]
  %v47 = vld [vmem:[%s1 + $0xf8] sm:$0xff]
  %v48 = vld [vmem:[%s1 + $0x100] sm:$0xff]
  %v49 = vld [vmem:[%s1 + $0x108] sm:$0xff]
  %v50 = vld [vmem:[%s1 + $0x110] sm:$0xff]
  %v51 = vld [vmem:[%s1 + $0x118] sm:$0xff]
  %v52 = vld [vmem:[%s1 + $0x120] sm:$0xff]
  %v53 = vld [vmem:[%s1 + $0x128] sm:$0xff]
  %v54 = vld [vmem:[%s1 + $0x130] sm:$0xff]
  %v55 = vld [vmem:[%s1 + $0x138] sm:$0xff]
  %v56 = vld [vmem:[%s1 + $0x140] sm:$0xff]
  %v57 = vld [vmem:[%s1 + $0x148] sm:$0xff]
  %v58 = vld [vmem:[%s1 + $0x150] sm:$0xff]
  %v59 = vld [vmem:[%s1 + $0x158] sm:$0xff]
  %v60 = vld [vmem:[%s1 + $0x160] sm:$0xff]
  %v61 = vld [vmem:[%s1 + $0x168] sm:$0xff]
  %v62 = vld [vmem:[%s1 + $0x170] sm:$0xff]
  %v63 = vld [vmem:[%s1 + $0x178] sm:$0xff]
  %v64 = vld [vmem:[%s1 + $0x180] sm:$0xff]
  %v65 = vld [vmem:[%s1 + $0x188] sm:$0xff]
  %v66 = vld [vmem:[%s1 + $0x190] sm:$0xff]
  %v67 = vld [vmem:[%s1 + $0x198] sm:$0xff]
  %v68 = vld [vmem:[%s1 + $0x1a0] sm:$0xff]
  %v69 = vld [vmem:[%s1 + $0x1a8] sm:$0xff]
  %v70 = vld [vmem:[%s1 + $0x1b0] sm:$0xff]
  %v71 = vld [vmem:[%s1 + $0x1b8] sm:$0xff]
  %v72 = vld [vmem:[%s1 + $0x1c0] sm:$0xff]
  %v73 = vld [vmem:[%s1 + $0x1c8] sm:$0xff]
  %v74 = vld [vmem:[%s1 + $0x1d0] sm:$0xff]
  %v75 = vld [vmem:[%s1 + $0x1d8] sm:$0xff]
  %v76 = vld [vmem:[%s1 + $0x1e0] sm:$0xff]
  %v77 = vld [vmem:[%s1 + $0x1e8] sm:$0xff]
  %v78 = vld [vmem:[%s1 + $0x1f0] sm:$0xff]
  %v79 = vld [vmem:[%s1 + $0x1f8] sm:$0xff]
  %v80 = vld [vmem:[%s1 + $0x200] sm:$0xff]
  %v81 = vld [vmem:[%s1 + $0x208] sm:$0xff]
  %v82 = vld [vmem:[%s1 + $0x210] sm:$0xff]
  %v83 = vld [vmem:[%s1 + $0x218] sm:$0xff]
  %v84 = vld [vmem:[%s1 + $0x220] sm:$0xff]
  %v85 = vld [vmem:[%s1 + $0x228] sm:$0xff]
  %v86 = vld [vmem:[%s1 + $0x230] sm:$0xff]
  %v87 = vld [vmem:[%s1 + $0x238] sm:$0xff]
  %v88 = vld [vmem:[%s1 + $0x240] sm:$0xff]
  %v89 = vld [vmem:[%s1 + $0x248] sm:$0xff]
  %v90 = vld [vmem:[%s1 + $0x250] sm:$0xff]
  %v91 = vld [vmem:[%s1 + $0x258] sm:$0xff]
  %v92 = vld [vmem:[%s1 + $0x260] sm:$0xff]
  %v93 = vld [vmem:[%s1 + $0x268] sm:$0xff]
  %v94 = vld [vmem:[%s1 + $0x270] sm:$0xff]
  %v95 = vld [vmem:[%s1 + $0x278] sm:$0xff]
  %v96 = vld [vmem:[%s1 + $0x280] sm:$0xff]
  %v97 = vld [vmem:[%s1 + $0x288] sm:$0xff]
  %v98 = vld [vmem:[%s1 + $0x290] sm:$0xff]
  %v99 = vld [vmem:[%s1 + $0x298] sm:$0xff]
  %v100 = vld [vmem:[%s1 + $0x2a0] sm:$0xff]
  %v101 = vld [vmem:[%s1 + $0x2a8] sm:$0xff]
  %v102 = vld [vmem:[%s1 + $0x2b0] sm:$0xff]
  %v103 = vld [vmem:[%s1 + $0x2b8] sm:$0xff]
  %v104 = vld [vmem:[%s1 + $0x2c0] sm:$0xff]
  %v105 = vld [vmem:[%s1 + $0x2c8] sm:$0xff]
  %v106 = vld [vmem:[%s1 + $0x2d0] sm:$0xff]
  %v107 = vld [vmem:[%s1 + $0x2d8] sm:$0xff]
  %v108 = vld [vmem:[%s1 + $0x2e0] sm:$0xff]
  %v109 = vld [vmem:[%s1 + $0x2e8] sm:$0xff]
  %v110 = vld [vmem:[%s1 + $0x2f0] sm:$0xff]
  %v111 = vld [vmem:[%s1 + $0x2f8] sm:$0xff]
  %v112 = vld [vmem:[%s1 + $0x300] sm:$0xff]
  %v113 = vld [vmem:[%s1 + $0x308] sm:$0xff]
  %v114 = vld [vmem:[%s1 + $0x310] sm:$0xff]
  %v115 = vld [vmem:[%s1 + $0x318] sm:$0xff]
  %v116 = vld [vmem:[%s1 + $0x320] sm:$0xff]
  %v117 = vld [vmem:[%s1 + $0x328] sm:$0xff]
  %v118 = vld [vmem:[%s1 + $0x330] sm:$0xff]
  %v119 = vld [vmem:[%s1 + $0x338] sm:$0xff]
  %v120 = vld [vmem:[%s1 + $0x340] sm:$0xff]
  %v121 = vld [vmem:[%s1 + $0x348] sm:$0xff]
  %v122 = vld [vmem:[%s1 + $0x350] sm:$0xff]
  %v123 = vld [vmem:[%s1 + $0x358] sm:$0xff]
  %v124 = vld [vmem:[%s1 + $0x360] sm:$0xff]
  %v125 = vld [vmem:[%s1 + $0x368] sm:$0xff]
  %v126 = vld [vmem:[%s1 + $0x370] sm:$0xff]
  %v127 = vld [vmem:[%s1 + $0x378] sm:$0xff]
  %v128 = vld [vmem:[%s1 + $0x380] sm:$0xff]
  %v129 = vld [vmem:[%s1 + $0x388] sm:$0xff]
  %v130 = vld [vmem:[%s1 + $0x390] sm:$0xff]
  %v131 = vld [vmem:[%s1 + $0x398] sm:$0xff]
  %v132 = vld [vmem:[%s1 + $0x3a0] sm:$0xff]
  %v133 = vld [vmem:[%s1 + $0x3a8] sm:$0xff]
  %v134 = vld [vmem:[%s1 + $0x3b0] sm:$0xff]
  %v135 = vld [vmem:[%s1 + $0x3b8] sm:$0xff]
  %v136 = vld [vmem:[%s1 + $0x3c0] sm:$0xff]
  %v137 = vld [vmem:[%s1 + $0x3c8] sm:$0xff]
  %v138 = vld [vmem:[%s1 + $0x3d0] sm:$0xff]
  %v139 = vld [vmem:[%s1 + $0x3d8] sm:$0xff]
  %v140 = vld [vmem:[%s1 + $0x3e0] sm:$0xff]
  %v141 = vld [vmem:[%s1 + $0x3e8] sm:$0xff]
  %v142 = vld [vmem:[%s1 + $0x3f0] sm:$0xff]
  %v143 = vld [vmem:[%s1 + $0x3f8] sm:$0xff]
  %v144 = vld [vmem:[%s1 + $0x400] sm:$0xff]
  %v145 = vld [vmem:[%s1 + $0x408] sm:$0xff]
  %v146 = vld [vmem:[%s1 + $0x410] sm:$0xff]
  %v147 = vld [vmem:[%s1 + $0x418] sm:$0xff]
  %v148 = vld [vmem:[%s1 + $0x420] sm:$0xff]
  %v149 = vld [vmem:[%s1 + $0x428] sm:$0xff]
  %v150 = vld [vmem:[%s1 + $0x430] sm:$0xff]
  %v151 = vld [vmem:[%s1 + $0x438] sm:$0xff]
  %v152 = vld [vmem:[%s1 + $0x440] sm:$0xff]
  %v153 = vld [vmem:[%s1 + $0x448] sm:$0xff]
  %v154 = vld [vmem:[%s1 + $0x450] sm:$0xff]
  %v155 = vld [vmem:[%s1 + $0x458] sm:$0xff]
  %v156 = vld [vmem:[%s1 + $0x460] sm:$0xff]
  %v157 = vld [vmem:[%s1 + $0x468] sm:$0xff]
  %v158 = vld [vmem:[%s1 + $0x470] sm:$0xff]
  %v159 = vld [vmem:[%s1 + $0x478] sm:$0xff]
  %v160 = vld [vmem:[%s1 + $0x480] sm:$0xff]
  %v161 = vld [vmem:[%s1 + $0x488] sm:$0xff]
  %v162 = vld [vmem:[%s1 + $0x490] sm:$0xff]
  %v163 = vld [vmem:[%s1 + $0x498] sm:$0xff]
  %v164 = vld [vmem:[%s1 + $0x4a0] sm:$0xff]
  %v165 = vld [vmem:[%s1 + $0x4a8] sm:$0xff]
  %v166 = vld [vmem:[%s1 + $0x4b0] sm:$0xff]
  %v167 = vld [vmem:[%s1 + $0x4b8] sm:$0xff]
  %v168 = vld [vmem:[%s1 + $0x4c0] sm:$0xff]
  %v169 = vld [vmem:[%s1 + $0x4c8] sm:$0xff]
  %v170 = vld [vmem:[%s1 + $0x4d0] sm:$0xff]
  %v171 = vld [vmem:[%s1 + $0x4d8] sm:$0xff]
  %v172 = vld [vmem:[%s1 + $0x4e0] sm:$0xff]
  %v173 = vld [vmem:[%s1 + $0x4e8] sm:$0xff]
  %v174 = vld [vmem:[%s1 + $0x4f0] sm:$0xff]
  %v175 = vld [vmem:[%s1 + $0x4f8] sm:$0xff]
  %v176 = vld [vmem:[%s1 + $0x500] sm:$0xff]
  %v177 = vld [vmem:[%s1 + $0x508] sm:$0xff]
  %v178 = vld [vmem:[%s1 + $0x510] sm:$0xff]
  %v179 = vld [vmem:[%s1 + $0x518] sm:$0xff]
  %v180 = vld [vmem:[%s1 + $0x520] sm:$0xff]
  %v181 = vld [vmem:[%s1 + $0x528] sm:$0xff]
  %v182 = vld [vmem:[%s1 + $0x530] sm:$0xff]
  %v183 = vld [vmem:[%s1 + $0x538] sm:$0xff]
  %v184 = vld [vmem:[%s1 + $0x540] sm:$0xff]
  %v185 = vld [vmem:[%s1 + $0x548] sm:$0xff]
  %v186 = vld [vmem:[%s1 + $0x550] sm:$0xff]
  %v187 = vld [vmem:[%s1 + $0x558] sm:$0xff]
  %v188 = vld [vmem:[%s1 + $0x560] sm:$0xff]
  %v189 = vld [vmem:[%s1 + $0x568] sm:$0xff]
  %v190 = vld [vmem:[%s1 + $0x570] sm:$0xff]
  %v191 = vld [vmem:[%s1 + $0x578] sm:$0xff]
  %v192 = vld [vmem:[%s1 + $0x580] sm:$0xff]
  %v193 = vld [vmem:[%s1 + $0x588] sm:$0xff]
  %v194 = vld [vmem:[%s1 + $0x590] sm:$0xff]
  %v195 = vld [vmem:[%s1 + $0x598] sm:$0xff]
  %v196 = vld [vmem:[%s1 + $0x5a0] sm:$0xff]
  %v197 = vld [vmem:[%s1 + $0x5a8] sm:$0xff]
  %v198 = vld [vmem:[%s1 + $0x5b0] sm:$0xff]
  %v199 = vld [vmem:[%s1 + $0x5b8] sm:$0xff]
  %v200 = vld [vmem:[%s1 + $0x5c0] sm:$0xff]
  %v201 = vld [vmem:[%s1 + $0x5c8] sm:$0xff]
  %v202 = vld [vmem:[%s1 + $0x5d0] sm:$0xff]
  %v203 = vld [vmem:[%s1 + $0x5d8] sm:$0xff]
  %v204 = vld [vmem:[%s1 + $0x5e0] sm:$0xff]
  %v205 = vld [vmem:[%s1 + $0x5e8] sm:$0xff]
  %v206 = vld [vmem:[%s1 + $0x5f0] sm:$0xff]
  %v207 = vld [vmem:[%s1 + $0x5f8] sm:$0xff]
  %v208 = vld [vmem:[%s1 + $0x600] sm:$0xff]
  %v209 = vld [vmem:[%s1 + $0x608] sm:$0xff]
  %v210 = vld [vmem:[%s1 + $0x610] sm:$0xff]
  %v211 = vld [vmem:[%s1 + $0x618] sm:$0xff]
  %v212 = vld [vmem:[%s1 + $0x620] sm:$0xff]
  %v213 = vld [vmem:[%s1 + $0x628] sm:$0xff]
  %v214 = vld [vmem:[%s1 + $0x630] sm:$0xff]
  %v215 = vld [vmem:[%s1 + $0x638] sm:$0xff]
  %v216 = vld [vmem:[%s1 + $0x640] sm:$0xff]
  %v217 = vld [vmem:[%s1 + $0x648] sm:$0xff]
  %v218 = vld [vmem:[%s1 + $0x650] sm:$0xff]
  %v219 = vld [vmem:[%s1 + $0x658] sm:$0xff]
  %v220 = vld [vmem:[%s1 + $0x660] sm:$0xff]
  %v221 = vld [vmem:[%s1 + $0x668] sm:$0xff]
  %v222 = vld [vmem:[%s1 + $0x670] sm:$0xff]
  %v223 = vld [vmem:[%s1 + $0x678] sm:$0xff]
  %v224 = vld [vmem:[%s1 + $0x680] sm:$0xff]
  %v225 = vld [vmem:[%s1 + $0x688] sm:$0xff]
  %v226 = vld [vmem:[%s1 + $0x690] sm:$0xff]
  %v227 = vld [vmem:[%s1 + $0x698] sm:$0xff]
  %v228 = vld [vmem:[%s1 + $0x6a0] sm:$0xff]
  %v229 = vld [vmem:[%s1 + $0x6a8] sm:$0xff]
  %v230 = vld [vmem:[%s1 + $0x6b0] sm:$0xff]
  %v231 = vld [vmem:[%s1 + $0x6b8] sm:$0xff]
  %v232 = vld [vmem:[%s1 + $0x6c0] sm:$0xff]
  %v233 = vld [vmem:[%s1 + $0x6c8] sm:$0xff]
  %v234 = vld [vmem:[%s1 + $0x6d0] sm:$0xff]
  %v235 = vld [vmem:[%s1 + $0x6d8] sm:$0xff]
  %v236 = vld [vmem:[%s1 + $0x6e0] sm:$0xff]
  %v237 = vld [vmem:[%s1 + $0x6e8] sm:$0xff]
  %v238 = vld [vmem:[%s1 + $0x6f0] sm:$0xff]
  %v239 = vld [vmem:[%s1 + $0x6f8] sm:$0xff]
  %v240 = vld [vmem:[%s1 + $0x700] sm:$0xff]
  %v241 = vld [vmem:[%s1 + $0x708] sm:$0xff]
  %v242 = vld [vmem:[%s1 + $0x710] sm:$0xff]
  %v243 = vld [vmem:[%s1 + $0x718] sm:$0xff]
  %v244 = vld [vmem:[%s1 + $0x720] sm:$0xff]
  %v245 = vld [vmem:[%s1 + $0x728] sm:$0xff]
  %v246 = vld [vmem:[%s1 + $0x730] sm:$0xff]
  %v247 = vld [vmem:[%s1 + $0x738] sm:$0xff]
  %v248 = vld [vmem:[%s1 + $0x740] sm:$0xff]
  %v249 = vld [vmem:[%s1 + $0x748] sm:$0xff]
  %v250 = vld [vmem:[%s1 + $0x750] sm:$0xff]
  %v251 = vld [vmem:[%s1 + $0x758] sm:$0xff]
  %v252 = vld [vmem:[%s1 + $0x760] sm:$0xff]
  %v253 = vld [vmem:[%s1 + $0x768] sm:$0xff]
  %v254 = vld [vmem:[%s1 + $0x770] sm:$0xff]
  %v255 = vld [vmem:[%s1 + $0x778] sm:$0xff]
  %v256 = vld [vmem:[%s1 + $0x780] sm:$0xff]
  %v257 = vld [vmem:[%s1 + $0x788] sm:$0xff]
  %v258 = vld [vmem:[%s1 + $0x790] sm:$0xff]
  %v259 = vld [vmem:[%s1 + $0x798] sm:$0xff]
  %v260 = vld [vmem:[%s1 + $0x7a0] sm:$0xff]
  %v261 = vld [vmem:[%s1 + $0x7a8] sm:$0xff]
  %v262 = vld [vmem:[%s1 + $0x7b0] sm:$0xff]
  %v263 = vld [vmem:[%s1 + $0x7b8] sm:$0xff]
  %v264 = vld [vmem:[%s1 + $0x7c0] sm:$0xff]
  %v265 = vld [vmem:[%s1 + $0x7c8] sm:$0xff]
  %v266 = vld [vmem:[%s1 + $0x7d0] sm:$0xff]
  %v267 = vld [vmem:[%s1 + $0x7d8] sm:$0xff]
  %v268 = vld [vmem:[%s1 + $0x7e0] sm:$0xff]
  %v269 = vld [vmem:[%s1 + $0x7e8] sm:$0xff]
  %v270 = vld [vmem:[%s1 + $0x7f0] sm:$0xff]
  %v271 = vld [vmem:[%s1 + $0x7f8] sm:$0xff]
  %v272 = vld [vmem:[%s1 + $0x800] sm:$0xff]
  %v273 = vld [vmem:[%s1 + $0x808] sm:$0xff]
  %v274 = vld [vmem:[%s1 + $0x810] sm:$0xff]
  %v275 = vld [vmem:[%s1 + $0x818] sm:$0xff]
  %v276 = vld [vmem:[%s1 + $0x820] sm:$0xff]
  %v277 = vld [vmem:[%s1 + $0x828] sm:$0xff]
  %v278 = vld [vmem:[%s1 + $0x830] sm:$0xff]
  %v279 = vld [vmem:[%s1 + $0x838] sm:$0xff]
  %v280 = vld [vmem:[%s1 + $0x840] sm:$0xff]
  %v281 = vld [vmem:[%s1 + $0x848] sm:$0xff]
  %v282 = vld [vmem:[%s1 + $0x850] sm:$0xff]
  %v283 = vld [vmem:[%s1 + $0x858] sm:$0xff]
  %v284 = vld [vmem:[%s1 + $0x860] sm:$0xff]
  %v285 = vld [vmem:[%s1 + $0x868] sm:$0xff]
  %v286 = vld [vmem:[%s1 + $0x870] sm:$0xff]
  %v287 = vld [vmem:[%s1 + $0x878] sm:$0xff]
  %v288 = vld [vmem:[%s1 + $0x880] sm:$0xff]
  %v289 = vld [vmem:[%s1 + $0x888] sm:$0xff]
  %v290 = vld [vmem:[%s1 + $0x890] sm:$0xff]
  %v291 = vld [vmem:[%s1 + $0x898] sm:$0xff]
  %v292 = vld [vmem:[%s1 + $0x8a0] sm:$0xff]
  %v293 = vld [vmem:[%s1 + $0x8a8] sm:$0xff]
  %v294 = vld [vmem:[%s1 + $0x8b0] sm:$0xff]
  %v295 = vld [vmem:[%s1 + $0x8b8] sm:$0xff]
  %v296 = vld [vmem:[%s1 + $0x8c0] sm:$0xff]
  %v297 = vld [vmem:[%s1 + $0x8c8] sm:$0xff]
  %v298 = vld [vmem:[%s1 + $0x8d0] sm:$0xff]
  %v299 = vld [vmem:[%s1 + $0x8d8] sm:$0xff]
  %v300 = vld [vmem:[%s1 + $0x8e0] sm:$0xff]
  %v301 = vld [vmem:[%s1 + $0x8e8] sm:$0xff]
  %v302 = vld [vmem:[%s1 + $0x8f0] sm:$0xff]
  %v303 = vld [vmem:[%s1 + $0x8f8] sm:$0xff]
  %v304 = vld [vmem:[%s1 + $0x900] sm:$0xff]
  %v305 = vld [vmem:[%s1 + $0x908] sm:$0xff]
  %v306 = vld [vmem:[%s1 + $0x910] sm:$0xff]
  %v307 = vld [vmem:[%s1 + $0x918] sm:$0x3f]
  %313 = vst [vmem:[#allocation1] ss:$4 sm:$0xff] %v11
  %s314 = scalar_lea.vmem [#allocation1], 32
  %315 = vst [vmem:[%s314] ss:$4 sm:$0xff] %v12
  %v316 = vld.sshfl [vmem:[#allocation1] sm:$0xff pattern:$0x73625140]
  %v317 = vld.sshfl [vmem:[#allocation1 + $0x8] sm:$0xff pattern:$0x73625140]
  %v318 = vld.sshfl [vmem:[#allocation1 + $0x10] sm:$0xff pattern:$0x73625140]
  %v319 = vld.sshfl [vmem:[#allocation1 + $0x18] sm:$0xff pattern:$0x73625140]
  %v320 = vld.sshfl [vmem:[#allocation1 + $0x20] sm:$0xff pattern:$0x73625140]
  %v321 = vld.sshfl [vmem:[#allocation1 + $0x28] sm:$0xff pattern:$0x73625140]
  %v322 = vld.sshfl [vmem:[#allocation1 + $0x30] sm:$0xff pattern:$0x73625140]
  %v323 = vld.sshfl [vmem:[#allocation1 + $0x38] sm:$0xff pattern:$0x73625140]
  %324 = vst [vmem:[#allocation1] ss:$4 sm:$0xff] %v13
  %325 = vst [vmem:[%s314] ss:$4 sm:$0xff] %v14
  %v326 = vld.sshfl [vmem:[#allocation1] sm:$0xff pattern:$0x73625140]
  %v327 = vld.sshfl [vmem:[#allocation1 + $0x8] sm:$0xff pattern:$0x73625140]
  %v328 = vld.sshfl [vmem:[#allocation1 + $0x10] sm:$0xff pattern:$0x73625140]
  %v329 = vld.sshfl [vmem:[#allocation1 + $0x18] sm:$0xff pattern:$0x73625140]
  %v330 = vld.sshfl [vmem:[#allocation1 + $0x20] sm:$0xff pattern:$0x73625140]
  %v331 = vld.sshfl [vmem:[#allocation1 + $0x28] sm:$0xff pattern:$0x73625140]
  %v332 = vld.sshfl [vmem:[#allocation1 + $0x30] sm:$0xff pattern:$0x73625140]
  %v333 = vld.sshfl [vmem:[#allocation1 + $0x38] sm:$0xff pattern:$0x73625140]
  %334 = vst [vmem:[#allocation1] ss:$4 sm:$0xff] %v15
  %v335 = vld.sshfl [vmem:[#allocation1] sm:$0xff pattern:$0x73625140]
  %v336 = vld.sshfl [vmem:[#allocation1 + $0x8] sm:$0xff pattern:$0x73625140]
  %v337 = vld.sshfl [vmem:[#allocation1 + $0x10] sm:$0xff pattern:$0x73625140]
  %vm356 = vcmask 244736
  %v357 = vsel %vm356, %v337, 0
  %vm359 = vcmask 1045504
  %v361 = vsel %vm359, %v307, 0
  %363 = vmatpush.msra.mxu0 %v31
  %364 = vmatpush.msra.mxu0 %v30
  %365 = vmatpush.msra.mxu0 %v29
  %366 = vmatpush.msra.mxu0 %v28
  %367 = vmatpush.msra.mxu0 %v27
  %368 = vmatpush.msra.mxu0 %v26
  %369 = vmatpush.msra.mxu0 %v25
  %370 = vmatpush.msra.mxu0 %v24
  %371 = vmatpush.msra.mxu0 %v23
  %372 = vmatpush.msra.mxu0 %v22
  %373 = vmatpush.msra.mxu0 %v21
  %374 = vmatpush.msra.mxu0 %v20
  %375 = vmatpush.msra.mxu0 %v19
  %376 = vmatpush.msra.mxu0 %v18
  %377 = vmatpush.msra.mxu0 %v17
  %378 = vmatpush.msra.mxu0 %v16
  %379 = vmatmul.f32.gmra.mxu0 %v316
  %v380 = vpop.f32.mrf.mxu0
  %v381 = vadd.f32 0.0, %v380
  %382 = vdwg.mxu0
  %383 = vmatpush.msra.mxu0 %v47
  %384 = vmatpush.msra.mxu0 %v46
  %385 = vmatpush.msra.mxu0 %v45
  %386 = vmatpush.msra.mxu0 %v44
  %387 = vmatpush.msra.mxu0 %v43
  %388 = vmatpush.msra.mxu0 %v42
  %389 = vmatpush.msra.mxu0 %v41
  %390 = vmatpush.msra.mxu0 %v40
  %391 = vmatpush.msra.mxu0 %v39
  %392 = vmatpush.msra.mxu0 %v38
  %393 = vmatpush.msra.mxu0 %v37
  %394 = vmatpush.msra.mxu0 %v36
  %395 = vmatpush.msra.mxu0 %v35
  %396 = vmatpush.msra.mxu0 %v34
  %397 = vmatpush.msra.mxu0 %v33
  %398 = vmatpush.msra.mxu0 %v32
  %399 = vmatmul.f32.gmra.mxu0 %v317
  %v400 = vpop.f32.mrf.mxu0
  %v401 = vadd.f32 %v381, %v400
  %402 = vdwg.mxu0
  %403 = vmatpush.msra.mxu0 %v63
  %404 = vmatpush.msra.mxu0 %v62
  %405 = vmatpush.msra.mxu0 %v61
  %406 = vmatpush.msra.mxu0 %v60
  %407 = vmatpush.msra.mxu0 %v59
  %408 = vmatpush.msra.mxu0 %v58
  %409 = vmatpush.msra.mxu0 %v57
  %410 = vmatpush.msra.mxu0 %v56
  %411 = vmatpush.msra.mxu0 %v55
  %412 = vmatpush.msra.mxu0 %v54
  %413 = vmatpush.msra.mxu0 %v53
  %414 = vmatpush.msra.mxu0 %v52
  %415 = vmatpush.msra.mxu0 %v51
  %416 = vmatpush.msra.mxu0 %v50
  %417 = vmatpush.msra.mxu0 %v49
  %418 = vmatpush.msra.mxu0 %v48
  %419 = vmatmul.f32.gmra.mxu0 %v318
  %v420 = vpop.f32.mrf.mxu0
  %v421 = vadd.f32 %v401, %v420
  %422 = vdwg.mxu0
  %423 = vmatpush.msra.mxu0 %v79
  %424 = vmatpush.msra.mxu0 %v78
  %425 = vmatpush.msra.mxu0 %v77
  %426 = vmatpush.msra.mxu0 %v76
  %427 = vmatpush.msra.mxu0 %v75
  %428 = vmatpush.msra.mxu0 %v74
  %429 = vmatpush.msra.mxu0 %v73
  %430 = vmatpush.msra.mxu0 %v72
  %431 = vmatpush.msra.mxu0 %v71
  %432 = vmatpush.msra.mxu0 %v70
  %433 = vmatpush.msra.mxu0 %v69
  %434 = vmatpush.msra.mxu0 %v68
  %435 = vmatpush.msra.mxu0 %v67
  %436 = vmatpush.msra.mxu0 %v66
  %437 = vmatpush.msra.mxu0 %v65
  %438 = vmatpush.msra.mxu0 %v64
  %439 = vmatmul.f32.gmra.mxu0 %v319
  %v440 = vpop.f32.mrf.mxu0
  %v441 = vadd.f32 %v421, %v440
  %442 = vdwg.mxu0
  %443 = vmatpush.msra.mxu0 %v95
  %444 = vmatpush.msra.mxu0 %v94
  %445 = vmatpush.msra.mxu0 %v93
  %446 = vmatpush.msra.mxu0 %v92
  %447 = vmatpush.msra.mxu0 %v91
  %448 = vmatpush.msra.mxu0 %v90
  %449 = vmatpush.msra.mxu0 %v89
  %450 = vmatpush.msra.mxu0 %v88
  %451 = vmatpush.msra.mxu0 %v87
  %452 = vmatpush.msra.mxu0 %v86
  %453 = vmatpush.msra.mxu0 %v85
  %454 = vmatpush.msra.mxu0 %v84
  %455 = vmatpush.msra.mxu0 %v83
  %456 = vmatpush.msra.mxu0 %v82
  %457 = vmatpush.msra.mxu0 %v81
  %458 = vmatpush.msra.mxu0 %v80
  %459 = vmatmul.f32.gmra.mxu0 %v320
  %v460 = vpop.f32.mrf.mxu0
  %v461 = vadd.f32 %v441, %v460
  %462 = vdwg.mxu0
  %463 = vmatpush.msra.mxu0 %v111
  %464 = vmatpush.msra.mxu0 %v110
  %465 = vmatpush.msra.mxu0 %v109
  %466 = vmatpush.msra.mxu0 %v108
  %467 = vmatpush.msra.mxu0 %v107
  %468 = vmatpush.msra.mxu0 %v106
  %469 = vmatpush.msra.mxu0 %v105
  %470 = vmatpush.msra.mxu0 %v104
  %471 = vmatpush.msra.mxu0 %v103
  %472 = vmatpush.msra.mxu0 %v102
  %473 = vmatpush.msra.mxu0 %v101
  %474 = vmatpush.msra.mxu0 %v100
  %475 = vmatpush.msra.mxu0 %v99
  %476 = vmatpush.msra.mxu0 %v98
  %477 = vmatpush.msra.mxu0 %v97
  %478 = vmatpush.msra.mxu0 %v96
  %479 = vmatmul.f32.gmra.mxu0 %v321
  %v480 = vpop.f32.mrf.mxu0
  %v481 = vadd.f32 %v461, %v480
  %482 = vdwg.mxu0
  %483 = vmatpush.msra.mxu0 %v127
  %484 = vmatpush.msra.mxu0 %v126
  %485 = vmatpush.msra.mxu0 %v125
  %486 = vmatpush.msra.mxu0 %v124
  %487 = vmatpush.msra.mxu0 %v123
  %488 = vmatpush.msra.mxu0 %v122
  %489 = vmatpush.msra.mxu0 %v121
  %490 = vmatpush.msra.mxu0 %v120
  %491 = vmatpush.msra.mxu0 %v119
  %492 = vmatpush.msra.mxu0 %v118
  %493 = vmatpush.msra.mxu0 %v117
  %494 = vmatpush.msra.mxu0 %v116
  %495 = vmatpush.msra.mxu0 %v115
  %496 = vmatpush.msra.mxu0 %v114
  %497 = vmatpush.msra.mxu0 %v113
  %498 = vmatpush.msra.mxu0 %v112
  %499 = vmatmul.f32.gmra.mxu0 %v322
  %v500 = vpop.f32.mrf.mxu0
  %v501 = vadd.f32 %v481, %v500
  %502 = vdwg.mxu0
  %503 = vmatpush.msra.mxu0 %v143
  %504 = vmatpush.msra.mxu0 %v142
  %505 = vmatpush.msra.mxu0 %v141
  %506 = vmatpush.msra.mxu0 %v140
  %507 = vmatpush.msra.mxu0 %v139
  %508 = vmatpush.msra.mxu0 %v138
  %509 = vmatpush.msra.mxu0 %v137
  %510 = vmatpush.msra.mxu0 %v136
  %511 = vmatpush.msra.mxu0 %v135
  %512 = vmatpush.msra.mxu0 %v134
  %513 = vmatpush.msra.mxu0 %v133
  %514 = vmatpush.msra.mxu0 %v132
  %515 = vmatpush.msra.mxu0 %v131
  %516 = vmatpush.msra.mxu0 %v130
  %517 = vmatpush.msra.mxu0 %v129
  %518 = vmatpush.msra.mxu0 %v128
  %519 = vmatmul.f32.gmra.mxu0 %v323
  %v520 = vpop.f32.mrf.mxu0
  %v521 = vadd.f32 %v501, %v520
  %522 = vdwg.mxu0
  %523 = vmatpush.msra.mxu0 %v159
  %524 = vmatpush.msra.mxu0 %v158
  %525 = vmatpush.msra.mxu0 %v157
  %526 = vmatpush.msra.mxu0 %v156
  %527 = vmatpush.msra.mxu0 %v155
  %528 = vmatpush.msra.mxu0 %v154
  %529 = vmatpush.msra.mxu0 %v153
  %530 = vmatpush.msra.mxu0 %v152
  %531 = vmatpush.msra.mxu0 %v151
  %532 = vmatpush.msra.mxu0 %v150
  %533 = vmatpush.msra.mxu0 %v149
  %534 = vmatpush.msra.mxu0 %v148
  %535 = vmatpush.msra.mxu0 %v147
  %536 = vmatpush.msra.mxu0 %v146
  %537 = vmatpush.msra.mxu0 %v145
  %538 = vmatpush.msra.mxu0 %v144
  %539 = vmatmul.f32.gmra.mxu0 %v326
  %v540 = vpop.f32.mrf.mxu0
  %v541 = vadd.f32 %v521, %v540
  %542 = vdwg.mxu0
  %543 = vmatpush.msra.mxu0 %v175
  %544 = vmatpush.msra.mxu0 %v174
  %545 = vmatpush.msra.mxu0 %v173
  %546 = vmatpush.msra.mxu0 %v172
  %547 = vmatpush.msra.mxu0 %v171
  %548 = vmatpush.msra.mxu0 %v170
  %549 = vmatpush.msra.mxu0 %v169
  %550 = vmatpush.msra.mxu0 %v168
  %551 = vmatpush.msra.mxu0 %v167
  %552 = vmatpush.msra.mxu0 %v166
  %553 = vmatpush.msra.mxu0 %v165
  %554 = vmatpush.msra.mxu0 %v164
  %555 = vmatpush.msra.mxu0 %v163
  %556 = vmatpush.msra.mxu0 %v162
  %557 = vmatpush.msra.mxu0 %v161
  %558 = vmatpush.msra.mxu0 %v160
  %559 = vmatmul.f32.gmra.mxu0 %v327
  %v560 = vpop.f32.mrf.mxu0
  %v561 = vadd.f32 %v541, %v560
  %562 = vdwg.mxu0
  %563 = vmatpush.msra.mxu0 %v191
  %564 = vmatpush.msra.mxu0 %v190
  %565 = vmatpush.msra.mxu0 %v189
  %566 = vmatpush.msra.mxu0 %v188
  %567 = vmatpush.msra.mxu0 %v187
  %568 = vmatpush.msra.mxu0 %v186
  %569 = vmatpush.msra.mxu0 %v185
  %570 = vmatpush.msra.mxu0 %v184
  %571 = vmatpush.msra.mxu0 %v183
  %572 = vmatpush.msra.mxu0 %v182
  %573 = vmatpush.msra.mxu0 %v181
  %574 = vmatpush.msra.mxu0 %v180
  %575 = vmatpush.msra.mxu0 %v179
  %576 = vmatpush.msra.mxu0 %v178
  %577 = vmatpush.msra.mxu0 %v177
  %578 = vmatpush.msra.mxu0 %v176
  %579 = vmatmul.f32.gmra.mxu0 %v328
  %v580 = vpop.f32.mrf.mxu0
  %v581 = vadd.f32 %v561, %v580
  %582 = vdwg.mxu0
  %583 = vmatpush.msra.mxu0 %v207
  %584 = vmatpush.msra.mxu0 %v206
  %585 = vmatpush.msra.mxu0 %v205
  %586 = vmatpush.msra.mxu0 %v204
  %587 = vmatpush.msra.mxu0 %v203
  %588 = vmatpush.msra.mxu0 %v202
  %589 = vmatpush.msra.mxu0 %v201
  %590 = vmatpush.msra.mxu0 %v200
  %591 = vmatpush.msra.mxu0 %v199
  %592 = vmatpush.msra.mxu0 %v198
  %593 = vmatpush.msra.mxu0 %v197
  %594 = vmatpush.msra.mxu0 %v196
  %595 = vmatpush.msra.mxu0 %v195
  %596 = vmatpush.msra.mxu0 %v194
  %597 = vmatpush.msra.mxu0 %v193
  %598 = vmatpush.msra.mxu0 %v192
  %599 = vmatmul.f32.gmra.mxu0 %v329
  %v600 = vpop.f32.mrf.mxu0
  %v601 = vadd.f32 %v581, %v600
  %602 = vdwg.mxu0
  %603 = vmatpush.msra.mxu0 %v223
  %604 = vmatpush.msra.mxu0 %v222
  %605 = vmatpush.msra.mxu0 %v221
  %606 = vmatpush.msra.mxu0 %v220
  %607 = vmatpush.msra.mxu0 %v219
  %608 = vmatpush.msra.mxu0 %v218
  %609 = vmatpush.msra.mxu0 %v217
  %610 = vmatpush.msra.mxu0 %v216
  %611 = vmatpush.msra.mxu0 %v215
  %612 = vmatpush.msra.mxu0 %v214
  %613 = vmatpush.msra.mxu0 %v213
  %614 = vmatpush.msra.mxu0 %v212
  %615 = vmatpush.msra.mxu0 %v211
  %616 = vmatpush.msra.mxu0 %v210
  %617 = vmatpush.msra.mxu0 %v209
  %618 = vmatpush.msra.mxu0 %v208
  %619 = vmatmul.f32.gmra.mxu0 %v330
  %v620 = vpop.f32.mrf.mxu0
  %v621 = vadd.f32 %v601, %v620
  %622 = vdwg.mxu0
  %623 = vmatpush.msra.mxu0 %v239
  %624 = vmatpush.msra.mxu0 %v238
  %625 = vmatpush.msra.mxu0 %v237
  %626 = vmatpush.msra.mxu0 %v236
  %627 = vmatpush.msra.mxu0 %v235
  %628 = vmatpush.msra.mxu0 %v234
  %629 = vmatpush.msra.mxu0 %v233
  %630 = vmatpush.msra.mxu0 %v232
  %631 = vmatpush.msra.mxu0 %v231
  %632 = vmatpush.msra.mxu0 %v230
  %633 = vmatpush.msra.mxu0 %v229
  %634 = vmatpush.msra.mxu0 %v228
  %635 = vmatpush.msra.mxu0 %v227
  %636 = vmatpush.msra.mxu0 %v226
  %637 = vmatpush.msra.mxu0 %v225
  %638 = vmatpush.msra.mxu0 %v224
  %639 = vmatmul.f32.gmra.mxu0 %v331
  %v640 = vpop.f32.mrf.mxu0
  %v641 = vadd.f32 %v621, %v640
  %642 = vdwg.mxu0
  %643 = vmatpush.msra.mxu0 %v255
  %644 = vmatpush.msra.mxu0 %v254
  %645 = vmatpush.msra.mxu0 %v253
  %646 = vmatpush.msra.mxu0 %v252
  %647 = vmatpush.msra.mxu0 %v251
  %648 = vmatpush.msra.mxu0 %v250
  %649 = vmatpush.msra.mxu0 %v249
  %650 = vmatpush.msra.mxu0 %v248
  %651 = vmatpush.msra.mxu0 %v247
  %652 = vmatpush.msra.mxu0 %v246
  %653 = vmatpush.msra.mxu0 %v245
  %654 = vmatpush.msra.mxu0 %v244
  %655 = vmatpush.msra.mxu0 %v243
  %656 = vmatpush.msra.mxu0 %v242
  %657 = vmatpush.msra.mxu0 %v241
  %658 = vmatpush.msra.mxu0 %v240
  %659 = vmatmul.f32.gmra.mxu0 %v332
  %v660 = vpop.f32.mrf.mxu0
  %v661 = vadd.f32 %v641, %v660
  %662 = vdwg.mxu0
  %663 = vmatpush.msra.mxu0 %v271
  %664 = vmatpush.msra.mxu0 %v270
  %665 = vmatpush.msra.mxu0 %v269
  %666 = vmatpush.msra.mxu0 %v268
  %667 = vmatpush.msra.mxu0 %v267
  %668 = vmatpush.msra.mxu0 %v266
  %669 = vmatpush.msra.mxu0 %v265
  %670 = vmatpush.msra.mxu0 %v264
  %671 = vmatpush.msra.mxu0 %v263
  %672 = vmatpush.msra.mxu0 %v262
  %673 = vmatpush.msra.mxu0 %v261
  %674 = vmatpush.msra.mxu0 %v260
  %675 = vmatpush.msra.mxu0 %v259
  %676 = vmatpush.msra.mxu0 %v258
  %677 = vmatpush.msra.mxu0 %v257
  %678 = vmatpush.msra.mxu0 %v256
  %679 = vmatmul.f32.gmra.mxu0 %v333
  %v680 = vpop.f32.mrf.mxu0
  %v681 = vadd.f32 %v661, %v680
  %682 = vdwg.mxu0
  %683 = vmatpush.msra.mxu0 %v287
  %684 = vmatpush.msra.mxu0 %v286
  %685 = vmatpush.msra.mxu0 %v285
  %686 = vmatpush.msra.mxu0 %v284
  %687 = vmatpush.msra.mxu0 %v283
  %688 = vmatpush.msra.mxu0 %v282
  %689 = vmatpush.msra.mxu0 %v281
  %690 = vmatpush.msra.mxu0 %v280
  %691 = vmatpush.msra.mxu0 %v279
  %692 = vmatpush.msra.mxu0 %v278
  %693 = vmatpush.msra.mxu0 %v277
  %694 = vmatpush.msra.mxu0 %v276
  %695 = vmatpush.msra.mxu0 %v275
  %696 = vmatpush.msra.mxu0 %v274
  %697 = vmatpush.msra.mxu0 %v273
  %698 = vmatpush.msra.mxu0 %v272
  %699 = vmatmul.f32.gmra.mxu0 %v335
  %v700 = vpop.f32.mrf.mxu0
  %v701 = vadd.f32 %v681, %v700
  %702 = vdwg.mxu0
  %703 = vmatpush.msra.mxu0 %v303
  %704 = vmatpush.msra.mxu0 %v302
  %705 = vmatpush.msra.mxu0 %v301
  %706 = vmatpush.msra.mxu0 %v300
  %707 = vmatpush.msra.mxu0 %v299
  %708 = vmatpush.msra.mxu0 %v298
  %709 = vmatpush.msra.mxu0 %v297
  %710 = vmatpush.msra.mxu0 %v296
  %711 = vmatpush.msra.mxu0 %v295
  %712 = vmatpush.msra.mxu0 %v294
  %713 = vmatpush.msra.mxu0 %v293
  %714 = vmatpush.msra.mxu0 %v292
  %715 = vmatpush.msra.mxu0 %v291
  %716 = vmatpush.msra.mxu0 %v290
  %717 = vmatpush.msra.mxu0 %v289
  %718 = vmatpush.msra.mxu0 %v288
  %719 = vmatmul.f32.gmra.mxu0 %v336
  %v720 = vpop.f32.mrf.mxu0
  %v721 = vadd.f32 %v701, %v720
  %722 = vdwg.mxu0
  %723 = vmatpush.msra.mxu0 0.0
  %724 = vmatpush.msra.mxu0 0.0
  %725 = vmatpush.msra.mxu0 0.0
  %726 = vmatpush.msra.mxu0 0.0
  %727 = vmatpush.msra.mxu0 0.0
  %728 = vmatpush.msra.mxu0 0.0
  %729 = vmatpush.msra.mxu0 0.0
  %730 = vmatpush.msra.mxu0 0.0
  %731 = vmatpush.msra.mxu0 0.0
  %732 = vmatpush.msra.mxu0 0.0
  %733 = vmatpush.msra.mxu0 0.0
  %734 = vmatpush.msra.mxu0 0.0
  %735 = vmatpush.msra.mxu0 %v361
  %736 = vmatpush.msra.mxu0 %v306
  %737 = vmatpush.msra.mxu0 %v305
  %738 = vmatpush.msra.mxu0 %v304
  %739 = vmatmul.f32.gmra.mxu0 %v357
  %v740 = vpop.f32.mrf.mxu0
  %v741 = vadd.f32 %v721, %v740
  %742 = vdwg.mxu0
  %743 = vst [vmem:[%s2] sm:$0x3] %v741
  // Predicated region
  $region10: #{mano_adaptor_forward.1} parent=0 // pred_check
    _
  $region11: #{mano_adaptor_forward.1} parent=0 // pred_check_branch
    %745 = sbr.rel (0) target = $region13
  $region12: #{mano_adaptor_forward.1} parent=0 // pred_region
    _
  $region13: #{mano_adaptor_forward.1} parent=0 // pred_fallthru
    _
  // Predicated region
  $region14: #{mano_adaptor_forward.1} parent=0 // pred_check
    _
  $region15: #{mano_adaptor_forward.1} parent=0 // pred_check_branch
    %747 = sbr.rel (0) target = $region17
  $region16: #{mano_adaptor_forward.1} parent=0 // pred_region
    _
  $region17: #{mano_adaptor_forward.1} parent=0 // pred_fallthru
    _

// kernel: sub.1
$region0: #{sub.1}
  #allocation2 [shape = 's32[1]{0}', space=sflag, size = 0x4, scoped, tag = 'scoped memory for sub.1']
  %s0 = inlined_call_operand.vmem [shape: f32[21,778], index: 0, kind: input, shape index: {}]
  %s1 = inlined_call_operand.vmem [shape: f32[21,778], index: 1, kind: input, shape index: {}]
  %s2 = inlined_call_operand.hbm [shape: f32[21,778], index: 2, kind: output, shape index: {}]
  $region1: #{sub.1} parent=0
    #allocation0 [shape = 'u8[86016]{0}', space=vmem, size = 0x15000, scoped, tag = 'operand span for operand 2']
    #allocation1 [shape = 's32[1]{0}', space=sflag, size = 0x4, scoped, tag = 'scoped memory for sub.1']
    %3 = vsyncpa [#allocation1], 0
    %v4 = vld [vmem:[%s0] sm:$0xff]
    %v5 = vld [vmem:[%s1] sm:$0xff]
    %6 = xla_tuple %v4, %v5
    %7 = xla_tuple %6
    %v8 = vsub.f32 %v4, %v5
    %9 = xla_tuple %v8
    %10 = vst [vmem:[#allocation0] sm:$0xff] %v8
    %s11 = scalar_lea.vmem %s0, 56
    %v12 = vld [vmem:[%s11] sm:$0xff]
    %s13 = scalar_lea.vmem %s1, 56
    %v14 = vld [vmem:[%s13] sm:$0xff]
    %15 = xla_tuple %v12, %v14
    %16 = xla_tuple %15
    %v17 = vsub.f32 %v12, %v14
    %18 = xla_tuple %v17
    %s19 = scalar_lea.vmem [#allocation0], 56
    %20 = vst [vmem:[%s19] sm:$0xff] %v17
    %s21 = scalar_lea.vmem %s0, 112
    %v22 = vld [vmem:[%s21] sm:$0xff]
    %s23 = scalar_lea.vmem %s1, 112
    %v24 = vld [vmem:[%s23] sm:$0xff]
    %25 = xla_tuple %v22, %v24
    %26 = xla_tuple %25
    %v27 = vsub.f32 %v22, %v24
    %28 = xla_tuple %v27
    %s29 = scalar_lea.vmem [#allocation0], 112
    %30 = vst [vmem:[%s29] sm:$0xff] %v27
    %s31 = scalar_lea.vmem %s0, 8
    %v32 = vld [vmem:[%s31] sm:$0xff]
    %s33 = scalar_lea.vmem %s1, 8
    %v34 = vld [vmem:[%s33] sm:$0xff]
    %35 = xla_tuple %v32, %v34
    %36 = xla_tuple %35
    %v37 = vsub.f32 %v32, %v34
    %38 = xla_tuple %v37
    %s39 = scalar_lea.vmem [#allocation0], 8
    %40 = vst [vmem:[%s39] sm:$0xff] %v37
    %s41 = scalar_lea.vmem %s0, 64
    %v42 = vld [vmem:[%s41] sm:$0xff]
    %s43 = scalar_lea.vmem %s1, 64
    %v44 = vld [vmem:[%s43] sm:$0xff]
    %45 = xla_tuple %v42, %v44
    %46 = xla_tuple %45
    %v47 = vsub.f32 %v42, %v44
    %48 = xla_tuple %v47
    %s49 = scalar_lea.vmem [#allocation0], 64
    %50 = vst [vmem:[%s49] sm:$0xff] %v47
    %s51 = scalar_lea.vmem %s0, 120
    %v52 = vld [vmem:[%s51] sm:$0xff]
    %s53 = scalar_lea.vmem %s1, 120
    %v54 = vld [vmem:[%s53] sm:$0xff]
    %55 = xla_tuple %v52, %v54
    %56 = xla_tuple %55
    %v57 = vsub.f32 %v52, %v54
    %58 = xla_tuple %v57
    %s59 = scalar_lea.vmem [#allocation0], 120
    %60 = vst [vmem:[%s59] sm:$0xff] %v57
    %s61 = scalar_lea.vmem %s0, 16
    %v62 = vld [vmem:[%s61] sm:$0xff]
    %s63 = scalar_lea.vmem %s1, 16
    %v64 = vld [vmem:[%s63] sm:$0xff]
    %65 = xla_tuple %v62, %v64
    %66 = xla_tuple %65
    %v67 = vsub.f32 %v62, %v64
    %68 = xla_tuple %v67
    %s69 = scalar_lea.vmem [#allocation0], 16
    %70 = vst [vmem:[%s69] sm:$0xff] %v67
    %s71 = scalar_lea.vmem %s0, 72
    %v72 = vld [vmem:[%s71] sm:$0xff]
    %s73 = scalar_lea.vmem %s1, 72
    %v74 = vld [vmem:[%s73] sm:$0xff]
    %75 = xla_tuple %v72, %v74
    %76 = xla_tuple %75
    %v77 = vsub.f32 %v72, %v74
    %78 = xla_tuple %v77
    %s79 = scalar_lea.vmem [#allocation0], 72
    %80 = vst [vmem:[%s79] sm:$0xff] %v77
    %s81 = scalar_lea.vmem %s0, 128
    %v82 = vld [vmem:[%s81] sm:$0xff]
    %s83 = scalar_lea.vmem %s1, 128
    %v84 = vld [vmem:[%s83] sm:$0xff]
    %85 = xla_tuple %v82, %v84
    %86 = xla_tuple %85
    %v87 = vsub.f32 %v82, %v84
    %88 = xla_tuple %v87
    %s89 = scalar_lea.vmem [#allocation0], 128
    %90 = vst [vmem:[%s89] sm:$0xff] %v87
    %s91 = scalar_lea.vmem %s0, 24
    %v92 = vld [vmem:[%s91] sm:$0xff]
    %s93 = scalar_lea.vmem %s1, 24
    %v94 = vld [vmem:[%s93] sm:$0xff]
    %95 = xla_tuple %v92, %v94
    %96 = xla_tuple %95
    %v97 = vsub.f32 %v92, %v94
    %98 = xla_tuple %v97
    %s99 = scalar_lea.vmem [#allocation0], 24
    %100 = vst [vmem:[%s99] sm:$0xff] %v97
    %s101 = scalar_lea.vmem %s0, 80
    %v102 = vld [vmem:[%s101] sm:$0xff]
    %s103 = scalar_lea.vmem %s1, 80
    %v104 = vld [vmem:[%s103] sm:$0xff]
    %105 = xla_tuple %v102, %v104
    %106 = xla_tuple %105
    %v107 = vsub.f32 %v102, %v104
    %108 = xla_tuple %v107
    %s109 = scalar_lea.vmem [#allocation0], 80
    %110 = vst [vmem:[%s109] sm:$0xff] %v107
    %s111 = scalar_lea.vmem %s0, 136
    %v112 = vld [vmem:[%s111] sm:$0xff]
    %s113 = scalar_lea.vmem %s1, 136
    %v114 = vld [vmem:[%s113] sm:$0xff]
    %115 = xla_tuple %v112, %v114
    %116 = xla_tuple %115
    %v117 = vsub.f32 %v112, %v114
    %118 = xla_tuple %v117
    %s119 = scalar_lea.vmem [#allocation0], 136
    %120 = vst [vmem:[%s119] sm:$0xff] %v117
    %s121 = scalar_lea.vmem %s0, 32
    %v122 = vld [vmem:[%s121] sm:$0xff]
    %s123 = scalar_lea.vmem %s1, 32
    %v124 = vld [vmem:[%s123] sm:$0xff]
    %125 = xla_tuple %v122, %v124
    %126 = xla_tuple %125
    %v127 = vsub.f32 %v122, %v124
    %128 = xla_tuple %v127
    %s129 = scalar_lea.vmem [#allocation0], 32
    %130 = vst [vmem:[%s129] sm:$0xff] %v127
    %s131 = scalar_lea.vmem %s0, 88
    %v132 = vld [vmem:[%s131] sm:$0xff]
    %s133 = scalar_lea.vmem %s1, 88
    %v134 = vld [vmem:[%s133] sm:$0xff]
    %135 = xla_tuple %v132, %v134
    %136 = xla_tuple %135
    %v137 = vsub.f32 %v132, %v134
    %138 = xla_tuple %v137
    %s139 = scalar_lea.vmem [#allocation0], 88
    %140 = vst [vmem:[%s139] sm:$0xff] %v137
    %s141 = scalar_lea.vmem %s0, 144
    %v142 = vld [vmem:[%s141] sm:$0xff]
    %s143 = scalar_lea.vmem %s1, 144
    %v144 = vld [vmem:[%s143] sm:$0xff]
    %145 = xla_tuple %v142, %v144
    %146 = xla_tuple %145
    %v147 = vsub.f32 %v142, %v144
    %148 = xla_tuple %v147
    %s149 = scalar_lea.vmem [#allocation0], 144
    %150 = vst [vmem:[%s149] sm:$0xff] %v147
    %s151 = scalar_lea.vmem %s0, 40
    %v152 = vld [vmem:[%s151] sm:$0xff]
    %s153 = scalar_lea.vmem %s1, 40
    %v154 = vld [vmem:[%s153] sm:$0xff]
    %155 = xla_tuple %v152, %v154
    %156 = xla_tuple %155
    %v157 = vsub.f32 %v152, %v154
    %158 = xla_tuple %v157
    %s159 = scalar_lea.vmem [#allocation0], 40
    %160 = vst [vmem:[%s159] sm:$0xff] %v157
    %s161 = scalar_lea.vmem %s0, 96
    %v162 = vld [vmem:[%s161] sm:$0xff]
    %s163 = scalar_lea.vmem %s1, 96
    %v164 = vld [vmem:[%s163] sm:$0xff]
    %165 = xla_tuple %v162, %v164
    %166 = xla_tuple %165
    %v167 = vsub.f32 %v162, %v164
    %168 = xla_tuple %v167
    %s169 = scalar_lea.vmem [#allocation0], 96
    %170 = vst [vmem:[%s169] sm:$0xff] %v167
    %s171 = scalar_lea.vmem %s0, 152
    %v172 = vld [vmem:[%s171] sm:$0xff]
    %s173 = scalar_lea.vmem %s1, 152
    %v174 = vld [vmem:[%s173] sm:$0xff]
    %175 = xla_tuple %v172, %v174
    %176 = xla_tuple %175
    %v177 = vsub.f32 %v172, %v174
    %178 = xla_tuple %v177
    %s179 = scalar_lea.vmem [#allocation0], 152
    %180 = vst [vmem:[%s179] sm:$0xff] %v177
    %s181 = scalar_lea.vmem %s0, 48
    %v182 = vld [vmem:[%s181] sm:$0xff]
    %s183 = scalar_lea.vmem %s1, 48
    %v184 = vld [vmem:[%s183] sm:$0xff]
    %185 = xla_tuple %v182, %v184
    %186 = xla_tuple %185
    %v187 = vsub.f32 %v182, %v184
    %188 = xla_tuple %v187
    %s189 = scalar_lea.vmem [#allocation0], 48
    %190 = vst [vmem:[%s189] sm:$0xff] %v187
    %s191 = scalar_lea.vmem %s0, 104
    %v192 = vld [vmem:[%s191] sm:$0xff]
    %s193 = scalar_lea.vmem %s1, 104
    %v194 = vld [vmem:[%s193] sm:$0xff]
    %195 = xla_tuple %v192, %v194
    %196 = xla_tuple %195
    %v197 = vsub.f32 %v192, %v194
    %198 = xla_tuple %v197
    %s199 = scalar_lea.vmem [#allocation0], 104
    %200 = vst [vmem:[%s199] sm:$0xff] %v197
    %s201 = scalar_lea.vmem %s0, 160
    %v202 = vld [vmem:[%s201] sm:$0xff]
    %s203 = scalar_lea.vmem %s1, 160
    %v204 = vld [vmem:[%s203] sm:$0xff]
    %205 = xla_tuple %v202, %v204
    %206 = xla_tuple %205
    %v207 = vsub.f32 %v202, %v204
    %208 = xla_tuple %v207
    %s209 = scalar_lea.vmem [#allocation0], 160
    %210 = vst [vmem:[%s209] sm:$0xff] %v207
    %212 = vsyncadd [#allocation1], 0
    %s213 = sshll.u32 [#allocation0], 4
    %s214 = int_to_ptr.vmem [resolvable:$true] %s213
    %s215 = sshll.u32 %s2, 4
    %s216 = int_to_ptr.hbm [resolvable:$true] %s215
    %221 = dma.vmem_to_hbm [thread:$0]  %s214, 2688, %s216, [#allocation1], 896, 896, 56
    %223 = dma.done [#allocation1], 2688
    %224 = vsyncpa [#allocation1], 1

</llo_original>
